<compile_context>
chip_gen: v6e
topology: v6e:2x2x1
jax: 0.10.0
libtpu: 0.0.40
codegen_flags: <defaults>
</compile_context>

<pallas_src>
import jax
import jax.numpy as jnp
from jax.experimental import pallas as pl
from jax.experimental.pallas import tpu as pltpu


def _make_ising_kernel(hk_max: float, radius: int):
    """Builds the Ising/Creutz update kernel (static hk_max/radius)."""

    def kernel(x_ref, mask_ref, o_ref):
        # Load the two channels directly as (TB, H, W) views -- avoids
        # materialising the full (TB, 2, H, W) block and slicing it afterwards.
        s = x_ref[:, 0, :, :]                # (TB, H, W) spin (+/-1)
        m = x_ref[:, 1, :, :]                # (TB, H, W) demon momentum
        mask = mask_ref[...] > 0.5           # (1, H, W), broadcasts over TB

        H = s.shape[1]
        W = s.shape[2]

        # Cross-shaped nearest-neighbour sum with circular boundary conditions:
        #   Js[i, j] = sum_{d=1..R} s[i, (j±d) mod W] + s[(i±d) mod H, j]
        # pltpu.roll requires non-negative shifts; roll(-d) == roll(size - d).
        js = jnp.zeros_like(s)
        for d in range(1, radius + 1):
            js = js + pltpu.roll(s, d % W, axis=2) + pltpu.roll(s, (-d) % W, axis=2)
            js = js + pltpu.roll(s, d % H, axis=1) + pltpu.roll(s, (-d) % H, axis=1)

        delta_e = 2.0 * s * js
        hk_new = m - delta_e
        conserve = jnp.logical_and(hk_new >= 0.0, hk_new <= hk_max)
        flip = jnp.logical_and(conserve, mask)           # (TB, H, W)

        # s * (-2*flip + 1)  ==  where(flip, -s, s)
        o_ref[:, 0, :, :] = jnp.where(flip, -s, s).astype(o_ref.dtype)
        o_ref[:, 1, :, :] = jnp.where(flip, hk_new, m).astype(o_ref.dtype)

    return kernel


def _pick_batch_tile(batch: int, h: int, w: int, itemsize: int,
                     vmem_budget_bytes: int = 8 * 1024 * 1024) -> int:
    """Largest batch tile TB such that (a) TB divides B, (b) the double-buffered
    in+out working set stays under a conservative VMEM budget (safe for v5e's
    16 MiB scoped default and v7x's 64 MiB VMEM), and (c) at least 2 grid steps
    remain so the 'parallel' grid axis can be sharded across both v7x
    TensorCores."""
    per_tb = 2 * 2 * 2 * h * w * itemsize   # (in + out) x double-buffer x 2 channels
    best = 1
    for tb in range(1, batch + 1):
        if batch % tb != 0:
            continue
        if tb * per_tb > vmem_budget_bytes:
            continue
        if batch >= 2 and batch // tb < 2:
            continue
        best = tb
    return best


def ising_ca_forward(x: jax.Array, dropout_mask: jax.Array,
                     hk_max: float, radius: int = 1) -> jax.Array:
    """Pallas implementation of isingCA.forward / Rule.forward.

    x:            (B, 2, H, W), NCHW (same layout as the PyTorch module).
    dropout_mask: (H, W) bool (rand > 0.75), shared across the batch.
    returns:      (B, 2, H, W), same dtype as x.
    """
    B, C, H, W = x.shape
    assert C == 2, "expected 2 channels: [spin, momentum]"

    mask = dropout_mask.astype(x.dtype)[None]              # (1, H, W)

    tb = _pick_batch_tile(B, H, W, jnp.dtype(x.dtype).itemsize)
    kernel = _make_ising_kernel(float(hk_max), int(radius))

    return pl.pallas_call(
        kernel,
        out_shape=jax.ShapeDtypeStruct((B, 2, H, W), x.dtype),
        grid=(B // tb,),
        in_specs=[
            pl.BlockSpec((tb, 2, H, W), lambda b: (b, 0, 0, 0)),   # NCHW block
            pl.BlockSpec((1, H, W), lambda b: (0, 0, 0)),          # shared mask
        ],
        out_specs=pl.BlockSpec((tb, 2, H, W), lambda b: (b, 0, 0, 0)),
        compiler_params=pltpu.CompilerParams(
            dimension_semantics=("parallel",),
        ),
    )(x, mask)


def _reference_forward(x, dropout_mask, hk_max, radius=1):
    """Pure-JAX reference (mirrors the PyTorch Rule.forward exactly)."""
    s = x[:, 0]
    m = x[:, 1]
    js = jnp.zeros_like(s)
    for d in range(1, radius + 1):
        js = js + jnp.roll(s, d, axis=2) + jnp.roll(s, -d, axis=2)
        js = js + jnp.roll(s, d, axis=1) + jnp.roll(s, -d, axis=1)
    delta_e = 2.0 * s * js
    hk_new = m - delta_e
    conserve = jnp.logical_and(hk_new >= 0.0, hk_new <= hk_max)
    flip = jnp.logical_and(conserve, dropout_mask[None])
    s_new = jnp.where(flip, -s, s)
    m_new = jnp.where(flip, hk_new, m)
    return jnp.stack([s_new, m_new], axis=1)


if __name__ == "__main__":
    HK_MAX = 8.0
    RADIUS = 1          # isingCA default
    B, H, W = 2, 16, 128

    key = jax.random.PRNGKey(0)
    k_spin, k_mom, k_mask = jax.random.split(key, 3)

    # initGrid-style deterministic construction (init_order=0.5, init_energy=HK_MAX)
    rand_spin = (jax.random.uniform(k_spin, (B, H, W)) > 0.5).astype(jnp.float32) * 2.0 - 1.0
    rand_momentum = jax.random.uniform(k_mom, (B, H, W)) * HK_MAX
    x = jnp.stack([rand_spin, rand_momentum], axis=1)        # (B, 2, H, W)

    # dropout mask: rand_like(x[0,0]) > 0.75, broadcast over batch
    dropout_mask = jax.random.uniform(k_mask, (H, W)) > 0.75

    out = ising_ca_forward(x, dropout_mask, HK_MAX, RADIUS)
    out = jax.block_until_ready(out)

    ref = _reference_forward(x, dropout_mask, HK_MAX, RADIUS)
    assert out.shape == (B, 2, H, W)
    assert jnp.allclose(out, ref, atol=1e-6), "Pallas output mismatch vs reference"

    print("KERNEL_OK")
</pallas_src>

<mosaic_0001>
module attributes {stable_mosaic.version = 11 : i64} {
  func.func @kernel(%arg0: i32, %arg1: memref<1x2x16x128xf32, #tpu.memory_space<vmem>>, %arg2: memref<1x16x128xf32, #tpu.memory_space<vmem>>, %arg3: memref<1x2x16x128xf32, #tpu.memory_space<vmem>>) attributes {dimension_semantics = [#tpu.dimension_semantics<parallel>], iteration_bounds = array<i64: 2>, scalar_prefetch = 0 : i64, scratch_operands = 0 : i64, tpu.core_type = #tpu.core_type<tc>, window_params = [{transform_indices = @transform_0, window_bounds = array<i64: 1, 2, 16, 128>}, {pipeline_mode = #tpu.pipeline_mode<synchronous>, transform_indices = @transform_1, window_bounds = array<i64: 1, 16, 128>}, {transform_indices = @transform_2, window_bounds = array<i64: 1, 2, 16, 128>}]} {
    %c0 = arith.constant 0 : index
    %c0_0 = arith.constant 0 : index
    %c0_1 = arith.constant 0 : index
    %c0_2 = arith.constant 0 : index
    %0 = vector.load %arg1[%c0, %c0_0, %c0_1, %c0_2] : memref<1x2x16x128xf32, #tpu.memory_space<vmem>>, vector<1x1x16x128xf32>
    %1 = vector.shape_cast %0 : vector<1x1x16x128xf32> to vector<1x16x128xf32>
    %c0_3 = arith.constant 0 : index
    %c1 = arith.constant 1 : index
    %c0_4 = arith.constant 0 : index
    %c0_5 = arith.constant 0 : index
    %2 = vector.load %arg1[%c0_3, %c1, %c0_4, %c0_5] : memref<1x2x16x128xf32, #tpu.memory_space<vmem>>, vector<1x1x16x128xf32>
    %3 = vector.shape_cast %2 : vector<1x1x16x128xf32> to vector<1x16x128xf32>
    %c0_6 = arith.constant 0 : index
    %c0_7 = arith.constant 0 : index
    %c0_8 = arith.constant 0 : index
    %4 = vector.load %arg2[%c0_6, %c0_7, %c0_8] : memref<1x16x128xf32, #tpu.memory_space<vmem>>, vector<1x16x128xf32>
    %cst = arith.constant 5.000000e-01 : f32
    %5 = vector.broadcast %cst : f32 to vector<1x16x128xf32>
    %6 = arith.cmpf ogt, %4, %5 : vector<1x16x128xf32>
    %cst_9 = arith.constant 0.000000e+00 : f32
    %7 = vector.broadcast %cst_9 : f32 to vector<1x16x128xf32>
    %c1_i32 = arith.constant 1 : i32
    %8 = tpu.dynamic_rotate %1 by %c1_i32 dim 2 : vector<1x16x128xf32>, i32 -> vector<1x16x128xf32>
    %9 = arith.addf %7, %8 : vector<1x16x128xf32>
    %c127_i32 = arith.constant 127 : i32
    %10 = tpu.dynamic_rotate %1 by %c127_i32 dim 2 : vector<1x16x128xf32>, i32 -> vector<1x16x128xf32>
    %11 = arith.addf %9, %10 : vector<1x16x128xf32>
    %c1_i32_10 = arith.constant 1 : i32
    %12 = tpu.dynamic_rotate %1 by %c1_i32_10 dim 1 : vector<1x16x128xf32>, i32 -> vector<1x16x128xf32>
    %13 = arith.addf %11, %12 : vector<1x16x128xf32>
    %c15_i32 = arith.constant 15 : i32
    %14 = tpu.dynamic_rotate %1 by %c15_i32 dim 1 : vector<1x16x128xf32>, i32 -> vector<1x16x128xf32>
    %15 = arith.addf %13, %14 : vector<1x16x128xf32>
    %cst_11 = arith.constant 2.000000e+00 : f32
    %16 = vector.broadcast %cst_11 : f32 to vector<1x16x128xf32>
    %17 = arith.mulf %16, %1 : vector<1x16x128xf32>
    %18 = arith.mulf %17, %15 : vector<1x16x128xf32>
    %19 = arith.subf %3, %18 : vector<1x16x128xf32>
    %cst_12 = arith.constant 0.000000e+00 : f32
    %20 = vector.broadcast %cst_12 : f32 to vector<1x16x128xf32>
    %21 = arith.cmpf oge, %19, %20 : vector<1x16x128xf32>
    %cst_13 = arith.constant 8.000000e+00 : f32
    %22 = vector.broadcast %cst_13 : f32 to vector<1x16x128xf32>
    %23 = arith.cmpf ole, %19, %22 : vector<1x16x128xf32>
    %24 = arith.andi %21, %23 : vector<1x16x128xi1>
    %25 = arith.andi %24, %6 : vector<1x16x128xi1>
    %cst_14 = arith.constant 0.000000e+00 : f32
    %26 = vector.broadcast %cst_14 : f32 to vector<1x16x128xf32>
    %27 = arith.subf %26, %1 : vector<1x16x128xf32>
    %28 = arith.select %25, %27, %1 : vector<1x16x128xi1>, vector<1x16x128xf32>
    %c0_15 = arith.constant 0 : index
    %c0_16 = arith.constant 0 : index
    %c0_17 = arith.constant 0 : index
    %c0_18 = arith.constant 0 : index
    %29 = vector.load %arg3[%c0_15, %c0_16, %c0_17, %c0_18] : memref<1x2x16x128xf32, #tpu.memory_space<vmem>>, vector<1x1x16x128xf32>
    %30 = vector.shape_cast %29 : vector<1x1x16x128xf32> to vector<1x16x128xf32>
    %31 = vector.shape_cast %28 : vector<1x16x128xf32> to vector<1x1x16x128xf32>
    tpu.vector_store %arg3[%c0_15, %c0_16, %c0_17, %c0_18], %31 {strides = array<i32>} : memref<1x2x16x128xf32, #tpu.memory_space<vmem>>, vector<1x1x16x128xf32>,
    %32 = arith.select %25, %19, %3 : vector<1x16x128xi1>, vector<1x16x128xf32>
    %c0_19 = arith.constant 0 : index
    %c1_20 = arith.constant 1 : index
    %c0_21 = arith.constant 0 : index
    %c0_22 = arith.constant 0 : index
    %33 = vector.load %arg3[%c0_19, %c1_20, %c0_21, %c0_22] : memref<1x2x16x128xf32, #tpu.memory_space<vmem>>, vector<1x1x16x128xf32>
    %34 = vector.shape_cast %33 : vector<1x1x16x128xf32> to vector<1x16x128xf32>
    %35 = vector.shape_cast %32 : vector<1x16x128xf32> to vector<1x1x16x128xf32>
    tpu.vector_store %arg3[%c0_19, %c1_20, %c0_21, %c0_22], %35 {strides = array<i32>} : memref<1x2x16x128xf32, #tpu.memory_space<vmem>>, vector<1x1x16x128xf32>,
    return
  }
  func.func @transform_0(%arg0: i32) -> (i32, i32, i32, i32) {
    %c0_i32 = arith.constant 0 : i32
    %c0_i32_0 = arith.constant 0 : i32
    %c0_i32_1 = arith.constant 0 : i32
    %c0_i32_2 = arith.constant 0 : i32
    return %arg0, %c0_i32, %c0_i32_0, %c0_i32_1 : i32, i32, i32, i32
  }
  func.func @transform_1(%arg0: i32) -> (i32, i32, i32) {
    %c0_i32 = arith.constant 0 : i32
    %c0_i32_0 = arith.constant 0 : i32
    %c0_i32_1 = arith.constant 0 : i32
    %c0_i32_2 = arith.constant 0 : i32
    return %c0_i32, %c0_i32_0, %c0_i32_1 : i32, i32, i32
  }
  func.func @transform_2(%arg0: i32) -> (i32, i32, i32, i32) {
    %c0_i32 = arith.constant 0 : i32
    %c0_i32_0 = arith.constant 0 : i32
    %c0_i32_1 = arith.constant 0 : i32
    %c0_i32_2 = arith.constant 0 : i32
    return %arg0, %c0_i32, %c0_i32_0, %c0_i32_1 : i32, i32, i32, i32
  }
}

</mosaic_0001>

<llo_original>
// kernel: tpu_custom_call.1
$region0: #{tpu_custom_call.1}
  #allocation0 [shape = 'u32[]', space=smem, size = 0x4, offset = 0x4, fixed_abs, tag = 'smem constant byte address 0x4 - core index']
  #allocation1 [shape = 'u32[144,128]{1,0:T(1,128)}', space=vmem, size = 0x12000, scoped, tag = 'internal scratch']
  %s0 = inlined_call_operand.hbm [shape: f32[2,2,16,128], index: 0, kind: input, shape index: {}]
  %s1 = inlined_call_operand.hbm [shape: f32[1,16,128], index: 1, kind: input, shape index: {}]
  %s2 = inlined_call_operand.hbm [shape: f32[2,2,16,128], index: 2, kind: output, shape index: {}]
  %s3 = sld [smem:[#allocation0]]
  $region49: #{tpu_custom_call.1} parent=0
    _
  %s5 = ssub.s32 1, %s3
  %s6 = scalar_select 0, %s5, %s3
  $region1: #{tpu_custom_call.1} parent=0
    #allocation2 [shape = 'u8[32768]{0}', space=vmem, size = 0x8000, scoped, tag = 'input window, operand 0']
    #allocation3 [shape = 's32[2]{0}', space=sflag, size = 0x8, scoped, tag = 'scoped memory for tpu_custom_call.1']
    #allocation4 [shape = 's32[2]{0}', space=sflag, size = 0x8, scoped, tag = 'scoped memory for tpu_custom_call.1']
    #allocation5 [shape = 'u8[8192]{0}', space=vmem, size = 0x2000, scoped, tag = 'input window, operand 1, single buffered']
    #allocation6 [shape = 's32[1]{0}', space=sflag, size = 0x4, scoped, tag = 'scoped memory for tpu_custom_call.1']
    #allocation7 [shape = 'u8[32768]{0}', space=vmem, size = 0x8000, scoped, tag = 'output window, operand 0']
    %7 = vsyncpa [#allocation3], 0
    %s8 = scalar_lea.sflag [#allocation3], 1
    %9 = vsyncpa %s8, 0
    %10 = vsyncpa [#allocation6], 0
    %11 = vsyncpa [#allocation4], 0
    %s12 = scalar_lea.sflag [#allocation4], 1
    %13 = vsyncpa %s12, 0
    loop: start=0, step=1, limit=4
    $region2: #{tpu_custom_call.1} parent=1 // loop_pre_header
      _
    $region3: #{tpu_custom_call.1} parent=1 // loop_header
      %s15 = sphi 0, %s19
      %p16 = scmp.ge.s32.totalorder %s15, 4
      %s25 = sphi 0, %s27
      %s28 = sphi 0, %s25
      %s29 = sphi 0, %s28
      %s45 = sphi 0, %s29
      %s49 = sphi 0, %s49
      %s51 = sphi 0, %s49
      %s52 = sphi 0, %s51
      %s66 = sphi 0, %s52
      %s72 = sphi 0, %s74
      %s75 = sphi 0, %s72
      %s76 = sphi 0, %s75
      %s92 = sphi 0, %s76
    $region4: #{tpu_custom_call.1} parent=1 // loop_header_branch
      %18 = sbr.rel (%p16) target = $region8
    $region5: #{tpu_custom_call.1} parent=1 // loop_body
      %s20 = ssub.s32 %s15, 1
      %s21 = ssub.s32 %s15, 2
      %s22 = sadd.s32 %s15, 1
      %s23 = ssub.s32 %s15, %s22
      %p24 = scmp.eq.s32.totalorder %s23, 0
      %s26 = sadd.s32 %s25, 1
      %s27 = scalar_select %p24, %s25, %s26
      %p30 = pneg %p24
      %p31 = scmp.eq.s32.totalorder %s15, 1
      %p32 = por %p30, %p31
      %p33 = scmp.ne.s32.totalorder %s25, %s28
      %p34 = scmp.eq.s32.totalorder %s15, 0
      %p35 = por %p33, %p34
      %p36 = scmp.ne.s32.totalorder %s25, %s28
      %p37 = scmp.eq.s32.totalorder %s20, 1
      %p38 = por %p36, %p37
      %p39 = scmp.ne.s32.totalorder %s28, %s29
      %p40 = scmp.eq.s32.totalorder %s20, 0
      %p41 = por %p39, %p40
      %p42 = scmp.ne.s32.totalorder %s28, %s29
      %p43 = scmp.eq.s32.totalorder %s21, 1
      %p44 = por %p42, %p43
      %p46 = scmp.ne.s32.totalorder %s29, %s45
      %p47 = scmp.eq.s32.totalorder %s21, 0
      %p48 = por %p46, %p47
      %s50 = sadd.s32 %s49, 1
      %p53 = scmp.eq.s32.totalorder %s15, 1
      %p54 = scmp.ne.s32.totalorder %s49, %s51
      %p55 = scmp.eq.s32.totalorder %s15, 0
      %p56 = por %p54, %p55
      %p57 = scmp.ne.s32.totalorder %s49, %s51
      %p58 = scmp.eq.s32.totalorder %s20, 1
      %p59 = por %p57, %p58
      %p60 = scmp.ne.s32.totalorder %s51, %s52
      %p61 = scmp.eq.s32.totalorder %s20, 0
      %p62 = por %p60, %p61
      %p63 = scmp.ne.s32.totalorder %s51, %s52
      %p64 = scmp.eq.s32.totalorder %s21, 1
      %p65 = por %p63, %p64
      %p67 = scmp.ne.s32.totalorder %s52, %s66
      %p68 = scmp.eq.s32.totalorder %s21, 0
      %p69 = por %p67, %p68
      %s70 = ssub.s32 %s15, %s22
      %p71 = scmp.eq.s32.totalorder %s70, 0
      %s73 = sadd.s32 %s72, 1
      %s74 = scalar_select %p71, %s72, %s73
      %p77 = pneg %p71
      %p78 = scmp.eq.s32.totalorder %s15, 1
      %p79 = por %p77, %p78
      %p80 = scmp.ne.s32.totalorder %s72, %s75
      %p81 = scmp.eq.s32.totalorder %s15, 0
      %p82 = por %p80, %p81
      %p83 = scmp.ne.s32.totalorder %s72, %s75
      %p84 = scmp.eq.s32.totalorder %s20, 1
      %p85 = por %p83, %p84
      %p86 = scmp.ne.s32.totalorder %s75, %s76
      %p87 = scmp.eq.s32.totalorder %s20, 0
      %p88 = por %p86, %p87
      %p89 = scmp.ne.s32.totalorder %s75, %s76
      %p90 = scmp.eq.s32.totalorder %s21, 1
      %p91 = por %p89, %p90
      %p93 = scmp.ne.s32.totalorder %s76, %s92
      %p94 = scmp.eq.s32.totalorder %s21, 0
      %p95 = por %p93, %p94
      %p96 = scmp.le.s32.totalorder 1, %s15
      %p97 = scmp.lt.s32.totalorder %s15, 3
      %p98 = pnand %p96, %p97
      %p99 = pneg %p98
      // Predicated region
      $region9: #{tpu_custom_call.1} parent=5 // pred_check
        _
      $region10: #{tpu_custom_call.1} parent=5 // pred_check_branch
        %101 = sbr.rel (%p98) target = $region12
      $region11: #{tpu_custom_call.1} parent=5 // pred_region
        %s102 = ssub.s32 %s15, 1
        // Predicated region
        $region13: #{tpu_custom_call.1} parent=11 // pred_check
          %p103 = pneg %p62
        $region14: #{tpu_custom_call.1} parent=11 // pred_check_branch
          %105 = sbr.rel (%p103) target = $region16
        $region15: #{tpu_custom_call.1} parent=11 // pred_region
          %s107 = ssub.s32 256, 256
          %108 = vsyncadd [#allocation6], %s107
          %s109 = sshll.u32 [#allocation5], 4
          %s110 = int_to_ptr.vmem [resolvable:$true] %s109
          %115 = dma.hbm_to_vmem [thread:$0]  %s1, 256, %s110, [#allocation6], 128, 128, 8
        $region16: #{tpu_custom_call.1} parent=11 // pred_fallthru
          _
      $region12: #{tpu_custom_call.1} parent=5 // pred_fallthru
        _
      %p116 = scmp.lt.s32.totalorder %s15, 2
      // Predicated region
      $region17: #{tpu_custom_call.1} parent=5 // pred_check
        %p117 = pneg %p116
      $region18: #{tpu_custom_call.1} parent=5 // pred_check_branch
        %119 = sbr.rel (%p117) target = $region20
      $region19: #{tpu_custom_call.1} parent=5 // pred_region
        // Predicated region
        $region21: #{tpu_custom_call.1} parent=19 // pred_check
          %p120 = pneg %p35
        $region22: #{tpu_custom_call.1} parent=19 // pred_check_branch
          %122 = sbr.rel (%p120) target = $region24
        $region23: #{tpu_custom_call.1} parent=19 // pred_region
          %s123 = sand.u32 %s25, 1
          %s124 = scalar_lea.sflag [#allocation3], %s123
          %s125 = sand.u32 %s25, 1
          %s126 = smul.addr %s125, 32
          %s127 = scalar_lea.vmem [#allocation2], %s126
          %s129 = ssub.s32 512, 512
          %130 = vsyncadd %s124, %s129
          %s131 = smul.addr %s15, 4
          %s132 = smul.addr %s131, 128
          %s133 = scalar_lea.hbm %s0, %s132
          %s134 = sshll.u32 %s127, 4
          %s135 = int_to_ptr.vmem [resolvable:$true] %s134
          %140 = dma.hbm_to_vmem [thread:$0]  %s133, 512, %s135, %s124, 128, 128, 8
        $region24: #{tpu_custom_call.1} parent=19 // pred_fallthru
          _
      $region20: #{tpu_custom_call.1} parent=5 // pred_fallthru
        _
      %p141 = scmp.le.s32.totalorder 1, %s15
      %p142 = scmp.lt.s32.totalorder %s15, 3
      %p143 = pnand %p141, %p142
      %p144 = pneg %p143
      // Predicated region
      $region25: #{tpu_custom_call.1} parent=5 // pred_check
        _
      $region26: #{tpu_custom_call.1} parent=5 // pred_check_branch
        %146 = sbr.rel (%p143) target = $region28
      $region27: #{tpu_custom_call.1} parent=5 // pred_region
        %s147 = ssub.s32 %s15, 1
        %s148 = sand.u32 %s28, 1
        %s149 = scalar_lea.sflag [#allocation3], %s148
        %s150 = sand.u32 %s28, 1
        %s151 = smul.addr %s150, 32
        %s152 = scalar_lea.vmem [#allocation2], %s151
        // Predicated region
        $region29: #{tpu_custom_call.1} parent=27 // pred_check
          %p153 = pneg %p41
        $region30: #{tpu_custom_call.1} parent=27 // pred_check_branch
          %155 = sbr.rel (%p153) target = $region32
        $region31: #{tpu_custom_call.1} parent=27 // pred_region
          %156 = dma.done %s149, 512
        $region32: #{tpu_custom_call.1} parent=27 // pred_fallthru
          _
        // Predicated region
        $region33: #{tpu_custom_call.1} parent=27 // pred_check
          %p157 = pneg %p62
        $region34: #{tpu_custom_call.1} parent=27 // pred_check_branch
          %159 = sbr.rel (%p157) target = $region36
        $region35: #{tpu_custom_call.1} parent=27 // pred_region
          %160 = dma.done [#allocation6], 256
        $region36: #{tpu_custom_call.1} parent=27 // pred_fallthru
          _
        %s161 = sand.u32 %s28, 1
        %s162 = scalar_lea.sflag [#allocation3], %s161
        %s163 = sand.u32 %s28, 1
        %s164 = smul.addr %s163, 32
        %s165 = scalar_lea.vmem [#allocation2], %s164
        %p166 = pneg %p41
        %p167 = pneg %p38
        %p168 = pneg %p62
        %p169 = pneg %p59
        %p170 = pneg %p88
        %p171 = pneg %p85
        %s172 = sand.u32 %s75, 1
        %s173 = scalar_lea.sflag [#allocation4], %s172
        %s174 = sand.u32 %s75, 1
        %s175 = smul.addr %s174, 32
        %s176 = scalar_lea.vmem [#allocation7], %s175
        %v177 = vld [vmem:[%s152] sm:$0xff]
        %v178 = vld [vmem:[%s152 + $0x8] sm:$0xff]
        %s179 = scalar_lea.vmem %s152, 16 [#allocation2]
        %v180 = vld [vmem:[%s179] sm:$0xff]
        %v181 = vld [vmem:[%s179 + $0x8] sm:$0xff]
        %v182 = vld [vmem:[#allocation5] sm:$0xff]
        %v183 = vld [vmem:[#allocation5 + $0x8] sm:$0xff]
        %vm184 = vcmp.gt.f32.partialorder %v182, 0.5
        %vm185 = vcmp.gt.f32.partialorder %v183, 0.5
        %186 = vrot.lane.b32.xlu0 %v177, 1
        %v187 = vpop.permute.xlu0 %186
        %188 = vrot.lane.b32.xlu0 %v178, 1
        %v189 = vpop.permute.xlu0 %188
        %v190 = vadd.f32 %v187, 0.0
        %v191 = vadd.f32 %v189, 0.0
        %192 = vrot.lane.b32.xlu0 %v177, 127
        %v193 = vpop.permute.xlu0 %192
        %194 = vrot.lane.b32.xlu0 %v178, 127
        %v195 = vpop.permute.xlu0 %194
        %v196 = vadd.f32 %v190, %v193
        %v197 = vadd.f32 %v191, %v195
        %v198 = vrot.slane %v177, 7
        %v199 = vrot.slane %v178, 7
        %v200 = vlaneseq
        %v201 = vshrl.u32 %v200, 7
        %vm202 = vcmp.lt.s32.totalorder %v201, 1
        %v203 = vsel %vm202, %v198, %v199
        %v204 = vsel %vm202, %v199, %v198
        %v205 = vadd.f32 %v196, %v204
        %v206 = vadd.f32 %v197, %v203
        %v207 = vrot.slane %v177, 1
        %v208 = vrot.slane %v178, 1
        %vm209 = vcmp.lt.s32.totalorder %v201, 7
        %v210 = vsel %vm209, %v207, %v208
        %v211 = vsel %vm209, %v208, %v207
        %v212 = vadd.f32 %v205, %v210
        %v213 = vadd.f32 %v206, %v211
        %v214 = vmul.f32 %v177, 2.0
        %v215 = vmul.f32 %v178, 2.0
        %v216 = vmul.f32 %v214, %v212
        %v217 = vmul.f32 %v215, %v213
        %v218 = vsub.f32 %v180, %v216
        %v219 = vsub.f32 %v181, %v217
        %vm220 = vcmp.ge.f32.partialorder %v218, 0.0
        %vm221 = vcmp.ge.f32.partialorder %v219, 0.0
        %vm222 = vcmp.le.f32.partialorder %v218, 8.0
        %vm223 = vcmp.le.f32.partialorder %v219, 8.0
        %vm224 = vmand %vm220, %vm222
        %vm225 = vmand %vm221, %vm223
        %vm226 = vmand %vm224, %vm184
        %vm227 = vmand %vm225, %vm185
        %v228 = vsub.f32 0.0, %v177
        %v229 = vsub.f32 0.0, %v178
        %v230 = vsel %vm226, %v228, %v177
        %v231 = vsel %vm227, %v229, %v178
        %232 = vst [vmem:[%s176] sm:$0xff] %v230
        %233 = vst [vmem:[%s176 + $0x8] sm:$0xff] %v231
        %v234 = vsel %vm226, %v218, %v180
        %v235 = vsel %vm227, %v219, %v181
        %s236 = scalar_lea.vmem %s176, 16 [#allocation7]
        %237 = vst [vmem:[%s236] sm:$0xff] %v234
        %238 = vst [vmem:[%s236 + $0x8] sm:$0xff] %v235
        %s239 = sand.u32 %s75, 1
        %s240 = scalar_lea.sflag [#allocation4], %s239
        %s241 = sand.u32 %s75, 1
        %s242 = smul.addr %s241, 32
        %s243 = scalar_lea.vmem [#allocation7], %s242
        // Predicated region
        $region37: #{tpu_custom_call.1} parent=27 // pred_check
          %p244 = pneg %p85
        $region38: #{tpu_custom_call.1} parent=27 // pred_check_branch
          %246 = sbr.rel (%p244) target = $region40
        $region39: #{tpu_custom_call.1} parent=27 // pred_region
          %s248 = ssub.s32 512, 512
          %249 = vsyncadd %s240, %s248
          %s250 = smul.addr %s20, 4
          %s251 = smul.addr %s250, 128
          %s252 = scalar_lea.hbm %s2, %s251
          %s253 = sshll.u32 %s243, 4
          %s254 = int_to_ptr.vmem [resolvable:$true] %s253
          %259 = dma.vmem_to_hbm [thread:$0]  %s254, 512, %s252, %s240, 128, 128, 8
        $region40: #{tpu_custom_call.1} parent=27 // pred_fallthru
          _
      $region28: #{tpu_custom_call.1} parent=5 // pred_fallthru
        _
      %p260 = scmp.le.s32.totalorder 2, %s15
      // Predicated region
      $region41: #{tpu_custom_call.1} parent=5 // pred_check
        %p261 = pneg %p260
      $region42: #{tpu_custom_call.1} parent=5 // pred_check_branch
        %263 = sbr.rel (%p261) target = $region44
      $region43: #{tpu_custom_call.1} parent=5 // pred_region
        %s264 = ssub.s32 %s15, 2
        // Predicated region
        $region45: #{tpu_custom_call.1} parent=43 // pred_check
          %p265 = pneg %p91
        $region46: #{tpu_custom_call.1} parent=43 // pred_check_branch
          %267 = sbr.rel (%p265) target = $region48
        $region47: #{tpu_custom_call.1} parent=43 // pred_region
          %s268 = sand.u32 %s76, 1
          %s269 = scalar_lea.sflag [#allocation4], %s268
          %s270 = sand.u32 %s76, 1
          %s271 = smul.addr %s270, 32
          %s272 = scalar_lea.vmem [#allocation7], %s271
          %273 = dma.done %s269, 512
        $region48: #{tpu_custom_call.1} parent=43 // pred_fallthru
          _
      $region44: #{tpu_custom_call.1} parent=5 // pred_fallthru
        _
    $region6: #{tpu_custom_call.1} parent=1 // loop_footer
      %s19 = sadd.s32 1, %s15
    $region7: #{tpu_custom_call.1} parent=1 // loop_footer_branch
      %14 = sbr.rel target = $region3
    $region8: #{tpu_custom_call.1} parent=1 // loop_exit
      _
    %274 = vsyncpa [#allocation3], 1
    %s275 = scalar_lea.sflag [#allocation3], 1
    %276 = vsyncpa %s275, 1
    %277 = vsyncpa [#allocation6], 1
    %278 = vsyncpa [#allocation4], 1
    %s279 = scalar_lea.sflag [#allocation4], 1
    %280 = vsyncpa %s279, 1

</llo_original>
